<compile_context>
chip_gen: v5e
topology: v5e:2x2
jax: 0.10.0
libtpu: 0.0.40
codegen_flags: <defaults>
</compile_context>

<pallas_src>
import jax
import jax.numpy as jnp
import numpy as np
from jax import lax
from jax.experimental import pallas as pl
from jax.experimental.pallas import tpu as pltpu

_EPS = 1e-12            # F.normalize default: x / max(||x||_2, eps)
_EPS_SQ = _EPS * _EPS   # rsqrt(max(sumsq, eps^2)) == 1 / max(||x||, eps)


# ---------------------------------------------------------------------------
# Pre-pass kernels (each runs over the whole operand exactly once).
# ---------------------------------------------------------------------------
def _x_row_scale_kernel(x_ref, o_ref):
    """o[i, 0] = 10 / max(||x[i, :]||_2, eps), K-accumulated then finalized."""
    k = pl.program_id(1)

    @pl.when(k == 0)
    def _():
        o_ref[...] = jnp.zeros_like(o_ref)

    xf = x_ref[...].astype(jnp.float32)
    o_ref[...] += jnp.sum(xf * xf, axis=1, keepdims=True)

    @pl.when(k == pl.num_programs(1) - 1)
    def _():
        o_ref[...] = 10.0 * lax.rsqrt(jnp.maximum(o_ref[...], _EPS_SQ))


def _w_col_scale_kernel(w_ref, o_ref):
    """o[0, j] = 1 / max(||w[:, j]||_2, eps), K-accumulated then finalized."""
    k = pl.program_id(1)

    @pl.when(k == 0)
    def _():
        o_ref[...] = jnp.zeros_like(o_ref)

    wf = w_ref[...].astype(jnp.float32)
    o_ref[...] += jnp.sum(wf * wf, axis=0, keepdims=True)

    @pl.when(k == pl.num_programs(1) - 1)
    def _():
        o_ref[...] = lax.rsqrt(jnp.maximum(o_ref[...], _EPS_SQ))


# ---------------------------------------------------------------------------
# Main matmul kernels: pure MXU loop, normalization only in the epilogue.
# ---------------------------------------------------------------------------
def _matmul_scale_f32_kernel(x_ref, w_ref, xs_ref, winv_ref, o_ref):
    """f32 output: accumulate directly into the resident output block."""
    k = pl.program_id(2)

    @pl.when(k == 0)
    def _():
        o_ref[...] = jnp.zeros_like(o_ref)

    o_ref[...] += jnp.dot(x_ref[...], w_ref[...],
                          preferred_element_type=jnp.float32)

    @pl.when(k == pl.num_programs(2) - 1)
    def _():
        o_ref[...] = o_ref[...] * xs_ref[...] * winv_ref[...]


def _matmul_scale_cast_kernel(x_ref, w_ref, xs_ref, winv_ref, o_ref, acc_ref):
    """Non-f32 output: f32 accumulator scratch, cast on the final store."""
    k = pl.program_id(2)

    @pl.when(k == 0)
    def _():
        acc_ref[...] = jnp.zeros_like(acc_ref)

    acc_ref[...] += jnp.dot(x_ref[...], w_ref[...],
                            preferred_element_type=jnp.float32)

    @pl.when(k == pl.num_programs(2) - 1)
    def _():
        o_ref[...] = (acc_ref[...] * xs_ref[...] * winv_ref[...]).astype(o_ref.dtype)


# ---------------------------------------------------------------------------
# Tiling helpers.
# ---------------------------------------------------------------------------
def _round_up(a, b):
    return -(-a // b) * b


def _fit_tile(dim, want, align):
    """Pick (tile, padded_dim).  tile is a multiple of `align` (or equals the
    padded dim), padded_dim % tile == 0.  For large dims, prefer a slightly
    smaller dividing tile over padding the whole operand through HBM."""
    if dim <= want:
        p = _round_up(dim, align)
        return p, p
    want = max(align, (want // align) * align)
    best_t, best_pad = want, _round_up(dim, want) - dim
    t = want - align
    while t >= max(align, want // 2) and best_pad > 0:
        pad = _round_up(dim, t) - dim
        if pad < best_pad:
            best_t, best_pad = t, pad
        t -= align
    return best_t, dim + best_pad


def _fit_k(dim, want):
    if dim <= want:
        return dim, dim  # full-dim K block is legal for both x (lane) and w (sublane)
    return _fit_tile(dim, want, 128)


# ---------------------------------------------------------------------------
# Wrapper.
# ---------------------------------------------------------------------------
def normed_linear(x, weight, *, tm=512, tn=512, tk=1024,
                  out_dtype=None, operand_dtype=jnp.bfloat16,
                  vmem_limit_bytes=None):
    """Pallas NormedLinear forward: 10 * normalize(x, 1) @ normalize(w, 0).

    operand_dtype: dtype the matmul operands are streamed/multiplied in
    (default bf16 for the fast MXU path; pass None to keep the native dtype).
    Accumulation and both norm scales are always f32.
    """
    M, K = x.shape
    K2, N = weight.shape
    assert K == K2, "in_features mismatch"
    out_dtype = out_dtype or x.dtype

    if operand_dtype is not None and x.dtype != jnp.dtype(operand_dtype):
        x = x.astype(operand_dtype)
    if operand_dtype is not None and weight.dtype != jnp.dtype(operand_dtype):
        weight = weight.astype(operand_dtype)

    # Tile selection: M aligned to 8 (sublane), N to 128 (lane-dense stores),
    # K full-dim when it fits in one block.
    tm, Mp = _fit_tile(M, tm, 8)
    tn, Np = _fit_tile(N, tn, 128)
    tk, Kp = _fit_k(K, tk)

    if (Mp, Kp) != (M, K):
        x = jnp.pad(x, ((0, Mp - M), (0, Kp - K)))
    if (Kp, Np) != (K, N):
        weight = jnp.pad(weight, ((0, Kp - K), (0, Np - N)))

    cp_pre = pltpu.CompilerParams(
        dimension_semantics=("parallel", "arbitrary"))

    # Pass A: x row scales (10 / ||row||), computed once, outside the hot loop.
    x_scale = pl.pallas_call(
        _x_row_scale_kernel,
        out_shape=jax.ShapeDtypeStruct((Mp, 1), jnp.float32),
        grid_spec=pltpu.PrefetchScalarGridSpec(
            num_scalar_prefetch=0,
            grid=(Mp // tm, Kp // tk),
            in_specs=[pl.BlockSpec((tm, tk), lambda i, k: (i, k))],
            out_specs=pl.BlockSpec((tm, 1), lambda i, k: (i, 0)),
        ),
        compiler_params=cp_pre,
    )(x)

    # Pass B: weight inverse column norms (1 / ||col||), computed once.
    w_inv = pl.pallas_call(
        _w_col_scale_kernel,
        out_shape=jax.ShapeDtypeStruct((1, Np), jnp.float32),
        grid_spec=pltpu.PrefetchScalarGridSpec(
            num_scalar_prefetch=0,
            grid=(Np // tn, Kp // tk),
            in_specs=[pl.BlockSpec((tk, tn), lambda j, k: (k, j))],
            out_specs=pl.BlockSpec((1, tn), lambda j, k: (0, j)),
        ),
        compiler_params=cp_pre,
    )(weight)

    # Pass C: tiled MXU matmul; normalization applied only in the epilogue.
    grid = (Mp // tm, Np // tn, Kp // tk)
    in_specs = [
        pl.BlockSpec((tm, tk), lambda i, j, k: (i, k)),   # x tile
        pl.BlockSpec((tk, tn), lambda i, j, k: (k, j)),   # w tile
        pl.BlockSpec((tm, 1), lambda i, j, k: (i, 0)),    # 10/||x row||
        pl.BlockSpec((1, tn), lambda i, j, k: (0, j)),    # 1/||w col||
    ]
    out_spec = pl.BlockSpec((tm, tn), lambda i, j, k: (i, j))

    if np.dtype(out_dtype) == np.dtype(np.float32):
        kernel, scratch = _matmul_scale_f32_kernel, []       # accumulate in-place
    else:
        kernel, scratch = _matmul_scale_cast_kernel, [pltpu.VMEM((tm, tn), jnp.float32)]

    out = pl.pallas_call(
        kernel,
        out_shape=jax.ShapeDtypeStruct((Mp, Np), out_dtype),
        grid_spec=pltpu.PrefetchScalarGridSpec(
            num_scalar_prefetch=0,
            grid=grid,
            in_specs=in_specs,
            out_specs=out_spec,
            scratch_shapes=scratch,
        ),
        compiler_params=pltpu.CompilerParams(
            dimension_semantics=("parallel", "parallel", "arbitrary"),
            vmem_limit_bytes=vmem_limit_bytes),
    )(x, weight, x_scale, w_inv)

    if (Mp, Np) != (M, N):
        out = out[:M, :N]
    return out


# ---------------------------------------------------------------------------
# Parameter init + reference (PyTorch semantics).
# ---------------------------------------------------------------------------
def init_normed_linear_weight(key, in_features, out_features):
    """Replica of: torch.Tensor(in,out).uniform_(-1,1).renorm_(2,1,1e-5).mul_(1e5)."""
    w = jax.random.uniform(key, (in_features, out_features),
                           minval=-1.0, maxval=1.0, dtype=jnp.float32)
    col_norm = jnp.sqrt(jnp.sum(w * w, axis=0, keepdims=True))
    maxnorm = 1e-5
    scale = jnp.where(col_norm > maxnorm, maxnorm / (col_norm + 1e-7), 1.0)
    return w * scale * 1e5


def _reference(x, w):
    xn = x / jnp.maximum(jnp.sqrt(jnp.sum(x * x, axis=1, keepdims=True)), _EPS)
    wn = w / jnp.maximum(jnp.sqrt(jnp.sum(w * w, axis=0, keepdims=True)), _EPS)
    return 10.0 * xn @ wn


if __name__ == "__main__":
    key = jax.random.PRNGKey(0)
    k_x, k_w = jax.random.split(key)

    batch, in_features, out_features = 8, 32, 16
    x = jax.random.normal(k_x, (batch, in_features), dtype=jnp.float32)
    weight = init_normed_linear_weight(k_w, in_features, out_features)

    ref = _reference(x, weight)

    # Exact-precision path (f32 operands): tight tolerance vs f32 reference.
    out_f32 = jax.block_until_ready(normed_linear(x, weight, operand_dtype=None))
    assert out_f32.shape == (batch, out_features)
    assert jnp.allclose(out_f32, ref, atol=1e-4, rtol=1e-4), "f32 mismatch vs reference"

    # Default fast path (bf16 MXU operands, f32 accumulation / norms):
    # expect agreement at bf16 rounding level (outputs bounded by 10).
    out_bf16 = jax.block_until_ready(normed_linear(x, weight))
    assert out_bf16.shape == (batch, out_features)
    assert jnp.allclose(out_bf16, ref, atol=8e-2, rtol=8e-2), "bf16 mismatch vs reference"

    print("KERNEL_OK")
</pallas_src>

<mosaic_0001>
module attributes {stable_mosaic.version = 11 : i64} {
  func.func @_x_row_scale_kernel(%arg0: i32, %arg1: i32, %arg2: memref<8x32xf32, #tpu.memory_space<vmem>>, %arg3: memref<8x1xf32, #tpu.memory_space<vmem>>) attributes {dimension_semantics = [#tpu.dimension_semantics<parallel>, #tpu.dimension_semantics<arbitrary>], iteration_bounds = array<i64: 1, 1>, scalar_prefetch = 0 : i64, scratch_operands = 0 : i64, tpu.core_type = #tpu.core_type<tc>, window_params = [{transform_indices = @transform_0, window_bounds = array<i64: 8, 32>}, {transform_indices = @transform_1, window_bounds = array<i64: 8, 1>}]} {
    %c0_i32 = arith.constant 0 : i32
    %0 = arith.cmpi eq, %arg1, %c0_i32 : i32
    %1 = arith.extui %0 : i1 to i32
    %c0_i32_0 = arith.constant 0 : i32
    %2 = arith.cmpi ne, %1, %c0_i32_0 : i32
    scf.if %2 {
      %cst_8 = arith.constant 0.000000e+00 : f32
      %13 = vector.broadcast %cst_8 : f32 to vector<8x1xf32>
      %c0_9 = arith.constant 0 : index
      %c0_10 = arith.constant 0 : index
      %14 = vector.load %arg3[%c0_9, %c0_10] : memref<8x1xf32, #tpu.memory_space<vmem>>, vector<8x1xf32>
      tpu.vector_store %arg3[%c0_9, %c0_10], %13 {strides = array<i32>} : memref<8x1xf32, #tpu.memory_space<vmem>>, vector<8x1xf32>,
    } else {
    }
    %c0 = arith.constant 0 : index
    %c0_1 = arith.constant 0 : index
    %3 = vector.load %arg2[%c0, %c0_1] : memref<8x32xf32, #tpu.memory_space<vmem>>, vector<8x32xf32>
    %c0_2 = arith.constant 0 : index
    %c0_3 = arith.constant 0 : index
    %4 = vector.load %arg3[%c0_2, %c0_3] : memref<8x1xf32, #tpu.memory_space<vmem>>, vector<8x1xf32>
    %5 = arith.mulf %3, %3 : vector<8x32xf32>
    %cst = arith.constant dense<0.000000e+00> : vector<8xf32>
    %6 = vector.multi_reduction <add>, %5, %cst [1] : vector<8x32xf32> to vector<8xf32>
    %7 = vector.shape_cast %6 : vector<8xf32> to vector<8x1xf32>
    %8 = arith.addf %4, %7 : vector<8x1xf32>
    %c0_4 = arith.constant 0 : index
    %c0_5 = arith.constant 0 : index
    %9 = vector.load %arg3[%c0_4, %c0_5] : memref<8x1xf32, #tpu.memory_space<vmem>>, vector<8x1xf32>
    tpu.vector_store %arg3[%c0_4, %c0_5], %8 {strides = array<i32>} : memref<8x1xf32, #tpu.memory_space<vmem>>, vector<8x1xf32>,
    %c0_i32_6 = arith.constant 0 : i32
    %10 = arith.cmpi eq, %arg1, %c0_i32_6 : i32
    %11 = arith.extui %10 : i1 to i32
    %c0_i32_7 = arith.constant 0 : i32
    %12 = arith.cmpi ne, %11, %c0_i32_7 : i32
    scf.if %12 {
      %c0_8 = arith.constant 0 : index
      %c0_9 = arith.constant 0 : index
      %13 = vector.load %arg3[%c0_8, %c0_9] : memref<8x1xf32, #tpu.memory_space<vmem>>, vector<8x1xf32>
      %cst_10 = arith.constant 1.000000e-24 : f32
      %14 = vector.broadcast %cst_10 : f32 to vector<8x1xf32>
      %15 = arith.maximumf %13, %14 : vector<8x1xf32>
      %16 = math.rsqrt %15 : vector<8x1xf32>
      %cst_11 = arith.constant 1.000000e+01 : f32
      %17 = vector.broadcast %cst_11 : f32 to vector<8x1xf32>
      %18 = arith.mulf %17, %16 : vector<8x1xf32>
      %c0_12 = arith.constant 0 : index
      %c0_13 = arith.constant 0 : index
      %19 = vector.load %arg3[%c0_12, %c0_13] : memref<8x1xf32, #tpu.memory_space<vmem>>, vector<8x1xf32>
      tpu.vector_store %arg3[%c0_12, %c0_13], %18 {strides = array<i32>} : memref<8x1xf32, #tpu.memory_space<vmem>>, vector<8x1xf32>,
    } else {
    }
    return
  }
  func.func @transform_0(%arg0: i32, %arg1: i32) -> (i32, i32) {
    %c0_i32 = arith.constant 0 : i32
    return %arg0, %arg1 : i32, i32
  }
  func.func @transform_1(%arg0: i32, %arg1: i32) -> (i32, i32) {
    %c0_i32 = arith.constant 0 : i32
    %c0_i32_0 = arith.constant 0 : i32
    return %arg0, %c0_i32 : i32, i32
  }
}

</mosaic_0001>

<llo_original>
// kernel: tpu_custom_call.1
$region0: #{tpu_custom_call.1}
  #allocation0 [shape = 'u32[]', space=smem, size = 0x4, offset = 0x4, fixed_abs, tag = 'smem constant byte address 0x4 - core index']
  #allocation1 [shape = 'u32[72,128]{1,0:T(1,128)}', space=vmem, size = 0x9000, scoped, tag = 'internal scratch']
  %s0 = inlined_call_operand.hbm [shape: f32[8,32], index: 0, kind: input, shape index: {}]
  %s1 = inlined_call_operand.vmem [shape: f32[8,1], index: 1, kind: output, shape index: {}]
  %s2 = sld [smem:[#allocation0]]
  $region26: #{tpu_custom_call.1} parent=0
    _
  %s4 = ssub.s32 1, %s2
  %s5 = scalar_select 0, %s4, %s2
  $region1: #{tpu_custom_call.1} parent=0
    #allocation2 [shape = 'u8[4096]{0}', space=vmem, size = 0x1000, scoped, tag = 'input window, operand 0, single buffered']
    #allocation3 [shape = 's32[1]{0}', space=sflag, size = 0x4, scoped, tag = 'scoped memory for tpu_custom_call.1']
    %6 = vsyncpa [#allocation3], 0
    // Predicated region
    $region2: #{tpu_custom_call.1} parent=1 // pred_check
      _
    $region3: #{tpu_custom_call.1} parent=1 // pred_check_branch
      %8 = sbr.rel (0) target = $region5
    $region4: #{tpu_custom_call.1} parent=1 // pred_region
      %10 = vsyncadd [#allocation3], 0
      %s12 = sshll.u32 %s0, 4
      %s13 = int_to_ptr.hbm [resolvable:$true] %s12
      %s14 = sshll.u32 [#allocation2], 4
      %s15 = int_to_ptr.vmem [resolvable:$true] %s14
      %17 = dma.hbm_to_vmem [thread:$0]  %s13, 128, %s15, [#allocation3]
    $region5: #{tpu_custom_call.1} parent=1 // pred_fallthru
      _
    // Predicated region
    $region6: #{tpu_custom_call.1} parent=1 // pred_check
      _
    $region7: #{tpu_custom_call.1} parent=1 // pred_check_branch
      %19 = sbr.rel (0) target = $region9
    $region8: #{tpu_custom_call.1} parent=1 // pred_region
      %21 = dma.done [#allocation3], 128
    $region9: #{tpu_custom_call.1} parent=1 // pred_fallthru
      _
    %p22 = scmp.eq.s32.totalorder 0, 0
    // Predicated region
    $region10: #{tpu_custom_call.1} parent=1 // pred_check
      %p23 = pneg %p22
    $region11: #{tpu_custom_call.1} parent=1 // pred_check_branch
      %25 = sbr.rel (%p23) target = $region13
    $region12: #{tpu_custom_call.1} parent=1 // pred_region
      %vm26 = vcmask 7168
      %27 = vst.msk [vmem:[%s1] sm:$0xff] %vm26, 0.0
    $region13: #{tpu_custom_call.1} parent=1 // pred_fallthru
      _
    %v28 = vld [vmem:[#allocation2] sm:$0xff]
    %v29 = vld [vmem:[%s1] sm:$0xff]
    %v30 = vmul.f32 %v28, %v28
    %vm31 = vcmask 261120
    %v32 = vsel %vm31, %v30, 0.0
    %33 = vadd.xlane.f32.xlu0 %v32
    %v34 = vpop.xlane.xlu0 %33
    %v35 = vadd.f32 %v29, %v34
    %vm36 = vcmask 7168
    %37 = vst.msk [vmem:[%s1] sm:$0xff] %vm36, %v35
    // Predicated region
    $region14: #{tpu_custom_call.1} parent=1 // pred_check
      %p38 = pneg %p22
    $region15: #{tpu_custom_call.1} parent=1 // pred_check_branch
      %40 = sbr.rel (%p38) target = $region17
    $region16: #{tpu_custom_call.1} parent=1 // pred_region
      %v41 = vld [vmem:[%s1] sm:$0xff]
      %v42 = vmax.f32 %v41, 1e-24
      %v43 = vrsqrt.pop %v42
      %v44 = vmul.f32 %v43, %v42
      %v45 = vmul.f32 %v44, %v43
      %v46 = vmul.f32 0.5, %v45
      %v47 = vsub.f32 1.5, %v46
      %v48 = vmul.f32 %v43, %v47
      %vm49 = vweird.f32 %v42
      %vm50 = vweird.f32 %v43
      %vm51 = vmor %vm49, %vm50
      %v52 = vsel %vm51, %v43, %v48
      %v53 = vmul.f32 %v52, 10.0
      %54 = vst.msk [vmem:[%s1] sm:$0xff] %vm36, %v53
    $region17: #{tpu_custom_call.1} parent=1 // pred_fallthru
      _
    // Predicated region
    $region18: #{tpu_custom_call.1} parent=1 // pred_check
      _
    $region19: #{tpu_custom_call.1} parent=1 // pred_check_branch
      %56 = sbr.rel (0) target = $region21
    $region20: #{tpu_custom_call.1} parent=1 // pred_region
      _
    $region21: #{tpu_custom_call.1} parent=1 // pred_fallthru
      _
    // Predicated region
    $region22: #{tpu_custom_call.1} parent=1 // pred_check
      _
    $region23: #{tpu_custom_call.1} parent=1 // pred_check_branch
      %58 = sbr.rel (0) target = $region25
    $region24: #{tpu_custom_call.1} parent=1 // pred_region
      _
    $region25: #{tpu_custom_call.1} parent=1 // pred_fallthru
      _
    %59 = vsyncpa [#allocation3], 1

</llo_original>
